<compile_context>
chip_gen: v7x
topology: tpu7x:2x2x1
jax: 0.10.0
libtpu: 0.0.40
codegen_flags: <defaults>
</compile_context>

<pallas_src>
import jax
import jax.numpy as jnp
from jax import lax
from jax.experimental import pallas as pl
from jax.experimental.pallas import tpu as pltpu

_LANES = 128
_CHUNK = 32                       # sublanes per inner-loop chunk (int8 tile height)
_PIX_ALIGN = _CHUNK * _LANES      # 4096: alignment of the padded pixel axis


def _round_up(x, m):
    return (x + m - 1) // m * m


def _dice_partial_kernel(x_ref, t_ref,
                         inter_out, psum_out, tsum_out,
                         inter_acc, psum_acc, tsum_acc):
    """Per (batch, split, pixel-tile) grid step.

    x_ref : (1, C, s_blk, 128)   logits block, native dtype (f32/bf16)
    t_ref : (1, 1, s_blk, 128)   class ids (int8/int32); padded tail == C
    *_out : (1, 1, C, 128)       per-(batch, split) lane partial sums
    *_acc : (C, 8, 128)          f32 accumulators, live across the tile axis
    """
    i = pl.program_id(2)
    num_classes = x_ref.shape[1]
    s_blk = x_ref.shape[2]
    n_chunks = s_blk // _CHUNK

    @pl.when(i == 0)
    def _():
        inter_acc[...] = jnp.zeros_like(inter_acc)
        psum_acc[...] = jnp.zeros_like(psum_acc)
        tsum_acc[...] = jnp.zeros_like(tsum_acc)

    def body(c, carry):
        r0 = pl.multiple_of(c * _CHUNK, _CHUNK)
        x = x_ref[0, :, pl.ds(r0, _CHUNK), :].astype(jnp.float32)   # (C, 32, 128)
        t = t_ref[0, :, pl.ds(r0, _CHUNK), :].astype(jnp.int32)     # (1, 32, 128)

        # Softmax over the class (leading) axis: elementwise VPU/EUP work on
        # full vregs — no cross-lane/sublane (XLU) reductions in the hot loop.
        m = jnp.max(x, axis=0, keepdims=True)
        e = jnp.exp(x - m)
        denom = jnp.sum(e, axis=0, keepdims=True)
        probs = e * pl.reciprocal(denom)          # exact: keeps rtol=1e-5 tight

        cls = lax.broadcasted_iota(jnp.int32, x.shape, 0)
        onehot = (cls == t).astype(jnp.float32)   # sentinel class C -> all zeros

        # Fold each statistic to one vreg-row per class (inter-vreg VPU adds)
        # before accumulating -> tiny scratch, minimal store-slot traffic.
        def fold(v):
            return jnp.sum(v.reshape(num_classes, _CHUNK // 8, 8, _LANES), axis=1)

        inter_acc[...] += fold(probs * onehot)
        psum_acc[...] += fold(probs)
        tsum_acc[...] += fold(onehot)
        return carry

    if n_chunks == 1:
        body(0, 0)
    else:
        unroll = 4 if n_chunks % 4 == 0 else (2 if n_chunks % 2 == 0 else 1)
        lax.fori_loop(0, n_chunks, body, 0, unroll=unroll)

    @pl.when(i == pl.num_programs(2) - 1)
    def _():
        # Single small sublane reduce per (batch, split); the O(N*C) dice
        # combine happens in plain JAX outside the kernel.
        inter_out[0, 0] = jnp.sum(inter_acc[...], axis=1)
        psum_out[0, 0] = jnp.sum(psum_acc[...], axis=1)
        tsum_out[0, 0] = jnp.sum(tsum_acc[...], axis=1)


def dice_loss_pallas(logits, targets, num_classes=2, smooth=1e-6,
                     target_tile_bytes=2 * 1024 * 1024):
    """logits: (N, num_classes, H, W) float (f32/bf16); targets: (N, H, W) int."""
    N, C, H, W = logits.shape
    assert C == num_classes
    HW = H * W

    dtype_bytes = jnp.dtype(logits.dtype).itemsize
    use_i8 = num_classes <= 126            # sentinel class id == C must fit int8
    tgt_dtype = jnp.int8 if use_i8 else jnp.int32
    tgt_bytes = 1 if use_i8 else 4

    # ---- Pixel-tile selection: big DMAs (amortize ~0.35us/grid-step fixed
    #      overhead) while keeping double-buffered inputs ~<=10 MiB so the
    #      kernel fits the default scoped VMEM on v5e/v6e/v7x. ----
    bytes_per_pixel = C * dtype_bytes + tgt_bytes
    tm = min(target_tile_bytes // (C * dtype_bytes),       # ~2 MiB logits / step
             (10 * 1024 * 1024) // (2 * bytes_per_pixel),  # 2x-buffered input cap
             1 << 20)
    tm = max(_PIX_ALIGN, tm // _PIX_ALIGN * _PIX_ALIGN)
    # NOTE: for extremely large C (>~500 at f32) the 4096-pixel minimum tile
    # would need a smaller alignment; not a realistic DiceLoss configuration.

    if HW <= tm:
        tm = _round_up(HW, _PIX_ALIGN)
        n_split, tiles_per_split = 1, 1
    else:
        num_tiles = -(-HW // tm)
        # Split the tile axis so both v7x TensorCores get work even at N=1.
        n_split = 2 if num_tiles >= 2 else 1
        tiles_per_split = -(-num_tiles // n_split)
    num_tiles = n_split * tiles_per_split
    HWp = num_tiles * tm
    pad = HWp - HW
    s_total = HWp // _LANES
    s_blk = tm // _LANES

    # Layout plumbing only: free reshape of contiguous NCHW (no transpose, no
    # dtype upcast). Padded logits are exactly 0 and padded targets use the
    # out-of-range class C, so intersection/tsum are untouched and psum picks
    # up an exactly-known pad/C bias removed in the combine below.
    x = logits.reshape(N, C, HW)
    t = targets.reshape(N, 1, HW).astype(tgt_dtype)
    if pad:
        x = jnp.pad(x, ((0, 0), (0, 0), (0, pad)))
        t = jnp.pad(t, ((0, 0), (0, 0), (0, pad)), constant_values=num_classes)
    x = x.reshape(N, C, s_total, _LANES)
    t = t.reshape(N, 1, s_total, _LANES)

    tps = tiles_per_split
    out_shape = tuple(jax.ShapeDtypeStruct((N, n_split, C, _LANES), jnp.float32)
                      for _ in range(3))
    out_spec = pl.BlockSpec((1, 1, C, _LANES), lambda n, sp, i: (n, sp, 0, 0))

    inter_p, psum_p, tsum_p = pl.pallas_call(
        _dice_partial_kernel,
        out_shape=out_shape,
        grid_spec=pltpu.PrefetchScalarGridSpec(
            num_scalar_prefetch=0,
            grid=(N, n_split, tiles_per_split),
            in_specs=[
                pl.BlockSpec((1, C, s_blk, _LANES),
                             lambda n, sp, i: (n, 0, sp * tps + i, 0)),
                pl.BlockSpec((1, 1, s_blk, _LANES),
                             lambda n, sp, i: (n, 0, sp * tps + i, 0)),
            ],
            out_specs=[out_spec, out_spec, out_spec],
            scratch_shapes=[pltpu.VMEM((C, 8, _LANES), jnp.float32)] * 3,
        ),
        compiler_params=pltpu.CompilerParams(
            # batch + split axes are independent (v7x megacore sharding);
            # the pixel-tile axis carries the accumulators -> arbitrary.
            dimension_semantics=("parallel", "parallel", "arbitrary"),
            vmem_limit_bytes=32 * 1024 * 1024),
    )(x, t)

    # Tiny O(N * n_split * C * 128) combine in plain JAX.
    inter = jnp.sum(inter_p, axis=(0, 1, 3))
    psum = jnp.sum(psum_p, axis=(0, 1, 3))
    tsum = jnp.sum(tsum_p, axis=(0, 1, 3))
    # Padded pixels (all-zero logits) each contribute exactly 1/C to psum.
    psum = psum - (N * pad) * (1.0 / num_classes)
    dice = (2.0 * inter + smooth) / (psum + tsum + smooth)
    return jnp.mean(1.0 - dice)


def dice_loss_ref(logits, targets, num_classes=2, smooth=1e-6):
    probs = jax.nn.softmax(logits.astype(jnp.float32), axis=1)
    onehot = jax.nn.one_hot(targets, num_classes, dtype=jnp.float32)
    onehot = jnp.transpose(onehot, (0, 3, 1, 2))
    loss = 0.0
    for i in range(num_classes):
        p = probs[:, i].reshape(-1)
        g = onehot[:, i].reshape(-1)
        inter = jnp.sum(p * g)
        dice = (2 * inter + smooth) / (jnp.sum(p) + jnp.sum(g) + smooth)
        loss += 1.0 - dice
    return loss / num_classes


if __name__ == "__main__":
    key = jax.random.PRNGKey(0)
    k1, k2, k3, k4, k5, k6 = jax.random.split(key, 6)

    # Test 1: module defaults (num_classes=2), NCHW (2, 2, 16, 16).
    logits = jax.random.normal(k1, (2, 2, 16, 16), dtype=jnp.float32)
    targets = jax.random.randint(k2, (2, 16, 16), 0, 2, dtype=jnp.int32)
    out = jax.block_until_ready(dice_loss_pallas(logits, targets, num_classes=2))
    ref = dice_loss_ref(logits, targets, num_classes=2)
    assert jnp.allclose(out, ref, rtol=1e-5, atol=1e-6), (out, ref)

    # Test 2: C=3, larger image -> one 16384-pixel tile, 4 inner chunks,
    # 1984 padded pixels (exercises the chunked fori_loop + pad/C correction).
    logits2 = jax.random.normal(k3, (1, 3, 120, 120), dtype=jnp.float32)
    targets2 = jax.random.randint(k4, (1, 120, 120), 0, 3, dtype=jnp.int32)
    out2 = jax.block_until_ready(dice_loss_pallas(logits2, targets2, num_classes=3))
    ref2 = dice_loss_ref(logits2, targets2, num_classes=3)
    assert jnp.allclose(out2, ref2, rtol=1e-5, atol=1e-6), (out2, ref2)

    # Test 3: forced small tile -> 4 tiles as 2 parallel splits x 2 tiles
    # (exercises multi-tile accumulation + per-split partial outputs).
    logits3 = jax.random.normal(k5, (1, 2, 96, 96), dtype=jnp.float32)
    targets3 = jax.random.randint(k6, (1, 96, 96), 0, 2, dtype=jnp.int32)
    out3 = jax.block_until_ready(
        dice_loss_pallas(logits3, targets3, num_classes=2,
                         target_tile_bytes=16 * 1024))
    ref3 = dice_loss_ref(logits3, targets3, num_classes=2)
    assert jnp.allclose(out3, ref3, rtol=1e-5, atol=1e-6), (out3, ref3)

    print("KERNEL_OK")
</pallas_src>

<mosaic_0001>
module attributes {stable_mosaic.version = 11 : i64} {
  func.func @_dice_partial_kernel(%arg0: i32, %arg1: i32, %arg2: i32, %arg3: memref<1x2x32x128xf32, #tpu.memory_space<vmem>>, %arg4: memref<1x1x32x128xi8, #tpu.memory_space<vmem>>, %arg5: memref<1x1x2x128xf32, #tpu.memory_space<vmem>>, %arg6: memref<1x1x2x128xf32, #tpu.memory_space<vmem>>, %arg7: memref<1x1x2x128xf32, #tpu.memory_space<vmem>>, %arg8: memref<2x8x128xf32, #tpu.memory_space<vmem>>, %arg9: memref<2x8x128xf32, #tpu.memory_space<vmem>>, %arg10: memref<2x8x128xf32, #tpu.memory_space<vmem>>) attributes {dimension_semantics = [#tpu.dimension_semantics<parallel>, #tpu.dimension_semantics<parallel>, #tpu.dimension_semantics<arbitrary>], iteration_bounds = array<i64: 2, 1, 1>, scalar_prefetch = 0 : i64, scratch_operands = 3 : i64, tpu.core_type = #tpu.core_type<tc>, window_params = [{transform_indices = @transform_0, window_bounds = array<i64: 1, 2, 32, 128>}, {transform_indices = @transform_1, window_bounds = array<i64: 1, 1, 32, 128>}, {transform_indices = @transform_2, window_bounds = array<i64: 1, 1, 2, 128>}, {transform_indices = @transform_3, window_bounds = array<i64: 1, 1, 2, 128>}, {transform_indices = @transform_4, window_bounds = array<i64: 1, 1, 2, 128>}]} {
    %c0_i32 = arith.constant 0 : i32
    %0 = arith.cmpi eq, %arg2, %c0_i32 : i32
    %1 = arith.extui %0 : i1 to i32
    %c0_i32_0 = arith.constant 0 : i32
    %2 = arith.cmpi ne, %1, %c0_i32_0 : i32
    scf.if %2 {
      %cst_31 = arith.constant 0.000000e+00 : f32
      %45 = vector.broadcast %cst_31 : f32 to vector<2x8x128xf32>
      %c0_32 = arith.constant 0 : index
      %c0_33 = arith.constant 0 : index
      %c0_34 = arith.constant 0 : index
      %46 = vector.load %arg8[%c0_32, %c0_33, %c0_34] : memref<2x8x128xf32, #tpu.memory_space<vmem>>, vector<2x8x128xf32>
      tpu.vector_store %arg8[%c0_32, %c0_33, %c0_34], %45 {strides = array<i32>} : memref<2x8x128xf32, #tpu.memory_space<vmem>>, vector<2x8x128xf32>,
      %cst_35 = arith.constant 0.000000e+00 : f32
      %47 = vector.broadcast %cst_35 : f32 to vector<2x8x128xf32>
      %c0_36 = arith.constant 0 : index
      %c0_37 = arith.constant 0 : index
      %c0_38 = arith.constant 0 : index
      %48 = vector.load %arg9[%c0_36, %c0_37, %c0_38] : memref<2x8x128xf32, #tpu.memory_space<vmem>>, vector<2x8x128xf32>
      tpu.vector_store %arg9[%c0_36, %c0_37, %c0_38], %47 {strides = array<i32>} : memref<2x8x128xf32, #tpu.memory_space<vmem>>, vector<2x8x128xf32>,
      %cst_39 = arith.constant 0.000000e+00 : f32
      %49 = vector.broadcast %cst_39 : f32 to vector<2x8x128xf32>
      %c0_40 = arith.constant 0 : index
      %c0_41 = arith.constant 0 : index
      %c0_42 = arith.constant 0 : index
      %50 = vector.load %arg10[%c0_40, %c0_41, %c0_42] : memref<2x8x128xf32, #tpu.memory_space<vmem>>, vector<2x8x128xf32>
      tpu.vector_store %arg10[%c0_40, %c0_41, %c0_42], %49 {strides = array<i32>} : memref<2x8x128xf32, #tpu.memory_space<vmem>>, vector<2x8x128xf32>,
    } else {
    }
    %c0_i32_1 = arith.constant 0 : i32
    %3 = tpu.assume_multiple %c0_i32_1, 32 : i32
    %c0 = arith.constant 0 : index
    %c0_2 = arith.constant 0 : index
    %4 = arith.index_cast %3 : i32 to index
    %c0_3 = arith.constant 0 : index
    %5 = vector.load %arg3[%c0, %c0_2, %4, %c0_3] : memref<1x2x32x128xf32, #tpu.memory_space<vmem>>, vector<1x2x32x128xf32>
    %6 = vector.shape_cast %5 : vector<1x2x32x128xf32> to vector<2x32x128xf32>
    %c0_4 = arith.constant 0 : index
    %c0_5 = arith.constant 0 : index
    %7 = arith.index_cast %3 : i32 to index
    %c0_6 = arith.constant 0 : index
    %8 = vector.load %arg4[%c0_4, %c0_5, %7, %c0_6] : memref<1x1x32x128xi8, #tpu.memory_space<vmem>>, vector<1x1x32x128xi8>
    %9 = vector.shape_cast %8 : vector<1x1x32x128xi8> to vector<1x32x128xi8>
    %10 = arith.extsi %9 : vector<1x32x128xi8> to vector<1x32x128xi32>
    %cst = arith.constant dense<0xFF800000> : vector<32x128xf32>
    %11 = vector.multi_reduction <maximumf>, %6, %cst [0] : vector<2x32x128xf32> to vector<32x128xf32>
    %12 = vector.shape_cast %11 : vector<32x128xf32> to vector<1x32x128xf32>
    %13 = vector.broadcast %12 : vector<1x32x128xf32> to vector<2x32x128xf32>
    %14 = arith.subf %6, %13 : vector<2x32x128xf32>
    %15 = math.exp %14 : vector<2x32x128xf32>
    %cst_7 = arith.constant dense<0.000000e+00> : vector<32x128xf32>
    %16 = vector.multi_reduction <add>, %15, %cst_7 [0] : vector<2x32x128xf32> to vector<32x128xf32>
    %17 = vector.shape_cast %16 : vector<32x128xf32> to vector<1x32x128xf32>
    %18 = tpu.reciprocal %17 : vector<1x32x128xf32> -> vector<1x32x128xf32>
    %19 = vector.broadcast %18 : vector<1x32x128xf32> to vector<2x32x128xf32>
    %20 = arith.mulf %15, %19 : vector<2x32x128xf32>
    %21 = tpu.iota {dimensions = array<i32: 0>} : vector<2x32x128xi32>
    %22 = vector.broadcast %10 : vector<1x32x128xi32> to vector<2x32x128xi32>
    %23 = arith.cmpi eq, %21, %22 : vector<2x32x128xi32>
    %24 = arith.extui %23 : vector<2x32x128xi1> to vector<2x32x128xi32>
    %25 = arith.sitofp %24 : vector<2x32x128xi32> to vector<2x32x128xf32>
    %c0_8 = arith.constant 0 : index
    %c0_9 = arith.constant 0 : index
    %c0_10 = arith.constant 0 : index
    %26 = vector.load %arg8[%c0_8, %c0_9, %c0_10] : memref<2x8x128xf32, #tpu.memory_space<vmem>>, vector<2x8x128xf32>
    %27 = arith.mulf %20, %25 : vector<2x32x128xf32>
    %28 = vector.shape_cast %27 : vector<2x32x128xf32> to vector<2x4x8x128xf32>
    %cst_11 = arith.constant dense<0.000000e+00> : vector<2x8x128xf32>
    %29 = vector.multi_reduction <add>, %28, %cst_11 [1] : vector<2x4x8x128xf32> to vector<2x8x128xf32>
    %30 = arith.addf %26, %29 : vector<2x8x128xf32>
    %c0_12 = arith.constant 0 : index
    %c0_13 = arith.constant 0 : index
    %c0_14 = arith.constant 0 : index
    %31 = vector.load %arg8[%c0_12, %c0_13, %c0_14] : memref<2x8x128xf32, #tpu.memory_space<vmem>>, vector<2x8x128xf32>
    tpu.vector_store %arg8[%c0_12, %c0_13, %c0_14], %30 {strides = array<i32>} : memref<2x8x128xf32, #tpu.memory_space<vmem>>, vector<2x8x128xf32>,
    %c0_15 = arith.constant 0 : index
    %c0_16 = arith.constant 0 : index
    %c0_17 = arith.constant 0 : index
    %32 = vector.load %arg9[%c0_15, %c0_16, %c0_17] : memref<2x8x128xf32, #tpu.memory_space<vmem>>, vector<2x8x128xf32>
    %33 = vector.shape_cast %20 : vector<2x32x128xf32> to vector<2x4x8x128xf32>
    %cst_18 = arith.constant dense<0.000000e+00> : vector<2x8x128xf32>
    %34 = vector.multi_reduction <add>, %33, %cst_18 [1] : vector<2x4x8x128xf32> to vector<2x8x128xf32>
    %35 = arith.addf %32, %34 : vector<2x8x128xf32>
    %c0_19 = arith.constant 0 : index
    %c0_20 = arith.constant 0 : index
    %c0_21 = arith.constant 0 : index
    %36 = vector.load %arg9[%c0_19, %c0_20, %c0_21] : memref<2x8x128xf32, #tpu.memory_space<vmem>>, vector<2x8x128xf32>
    tpu.vector_store %arg9[%c0_19, %c0_20, %c0_21], %35 {strides = array<i32>} : memref<2x8x128xf32, #tpu.memory_space<vmem>>, vector<2x8x128xf32>,
    %c0_22 = arith.constant 0 : index
    %c0_23 = arith.constant 0 : index
    %c0_24 = arith.constant 0 : index
    %37 = vector.load %arg10[%c0_22, %c0_23, %c0_24] : memref<2x8x128xf32, #tpu.memory_space<vmem>>, vector<2x8x128xf32>
    %38 = vector.shape_cast %25 : vector<2x32x128xf32> to vector<2x4x8x128xf32>
    %cst_25 = arith.constant dense<0.000000e+00> : vector<2x8x128xf32>
    %39 = vector.multi_reduction <add>, %38, %cst_25 [1] : vector<2x4x8x128xf32> to vector<2x8x128xf32>
    %40 = arith.addf %37, %39 : vector<2x8x128xf32>
    %c0_26 = arith.constant 0 : index
    %c0_27 = arith.constant 0 : index
    %c0_28 = arith.constant 0 : index
    %41 = vector.load %arg10[%c0_26, %c0_27, %c0_28] : memref<2x8x128xf32, #tpu.memory_space<vmem>>, vector<2x8x128xf32>
    tpu.vector_store %arg10[%c0_26, %c0_27, %c0_28], %40 {strides = array<i32>} : memref<2x8x128xf32, #tpu.memory_space<vmem>>, vector<2x8x128xf32>,
    %c0_i32_29 = arith.constant 0 : i32
    %42 = arith.cmpi eq, %arg2, %c0_i32_29 : i32
    %43 = arith.extui %42 : i1 to i32
    %c0_i32_30 = arith.constant 0 : i32
    %44 = arith.cmpi ne, %43, %c0_i32_30 : i32
    scf.if %44 {
      %c0_31 = arith.constant 0 : index
      %c0_32 = arith.constant 0 : index
      %c0_33 = arith.constant 0 : index
      %45 = vector.load %arg8[%c0_31, %c0_32, %c0_33] : memref<2x8x128xf32, #tpu.memory_space<vmem>>, vector<2x8x128xf32>
      %cst_34 = arith.constant dense<0.000000e+00> : vector<2x128xf32>
      %46 = vector.multi_reduction <add>, %45, %cst_34 [1] : vector<2x8x128xf32> to vector<2x128xf32>
      %c0_35 = arith.constant 0 : index
      %c0_36 = arith.constant 0 : index
      %c0_37 = arith.constant 0 : index
      %c0_38 = arith.constant 0 : index
      %47 = vector.load %arg5[%c0_35, %c0_36, %c0_37, %c0_38] : memref<1x1x2x128xf32, #tpu.memory_space<vmem>>, vector<1x1x2x128xf32>
      %48 = vector.shape_cast %47 : vector<1x1x2x128xf32> to vector<2x128xf32>
      %49 = vector.shape_cast %46 : vector<2x128xf32> to vector<1x1x2x128xf32>
      tpu.vector_store %arg5[%c0_35, %c0_36, %c0_37, %c0_38], %49 {strides = array<i32>} : memref<1x1x2x128xf32, #tpu.memory_space<vmem>>, vector<1x1x2x128xf32>,
      %c0_39 = arith.constant 0 : index
      %c0_40 = arith.constant 0 : index
      %c0_41 = arith.constant 0 : index
      %50 = vector.load %arg9[%c0_39, %c0_40, %c0_41] : memref<2x8x128xf32, #tpu.memory_space<vmem>>, vector<2x8x128xf32>
      %cst_42 = arith.constant dense<0.000000e+00> : vector<2x128xf32>
      %51 = vector.multi_reduction <add>, %50, %cst_42 [1] : vector<2x8x128xf32> to vector<2x128xf32>
      %c0_43 = arith.constant 0 : index
      %c0_44 = arith.constant 0 : index
      %c0_45 = arith.constant 0 : index
      %c0_46 = arith.constant 0 : index
      %52 = vector.load %arg6[%c0_43, %c0_44, %c0_45, %c0_46] : memref<1x1x2x128xf32, #tpu.memory_space<vmem>>, vector<1x1x2x128xf32>
      %53 = vector.shape_cast %52 : vector<1x1x2x128xf32> to vector<2x128xf32>
      %54 = vector.shape_cast %51 : vector<2x128xf32> to vector<1x1x2x128xf32>
      tpu.vector_store %arg6[%c0_43, %c0_44, %c0_45, %c0_46], %54 {strides = array<i32>} : memref<1x1x2x128xf32, #tpu.memory_space<vmem>>, vector<1x1x2x128xf32>,
      %c0_47 = arith.constant 0 : index
      %c0_48 = arith.constant 0 : index
      %c0_49 = arith.constant 0 : index
      %55 = vector.load %arg10[%c0_47, %c0_48, %c0_49] : memref<2x8x128xf32, #tpu.memory_space<vmem>>, vector<2x8x128xf32>
      %cst_50 = arith.constant dense<0.000000e+00> : vector<2x128xf32>
      %56 = vector.multi_reduction <add>, %55, %cst_50 [1] : vector<2x8x128xf32> to vector<2x128xf32>
      %c0_51 = arith.constant 0 : index
      %c0_52 = arith.constant 0 : index
      %c0_53 = arith.constant 0 : index
      %c0_54 = arith.constant 0 : index
      %57 = vector.load %arg7[%c0_51, %c0_52, %c0_53, %c0_54] : memref<1x1x2x128xf32, #tpu.memory_space<vmem>>, vector<1x1x2x128xf32>
      %58 = vector.shape_cast %57 : vector<1x1x2x128xf32> to vector<2x128xf32>
      %59 = vector.shape_cast %56 : vector<2x128xf32> to vector<1x1x2x128xf32>
      tpu.vector_store %arg7[%c0_51, %c0_52, %c0_53, %c0_54], %59 {strides = array<i32>} : memref<1x1x2x128xf32, #tpu.memory_space<vmem>>, vector<1x1x2x128xf32>,
    } else {
    }
    return
  }
  func.func @transform_0(%arg0: i32, %arg1: i32, %arg2: i32) -> (i32, i32, i32, i32) {
    %c1_i32 = arith.constant 1 : i32
    %0 = arith.muli %arg1, %c1_i32 : i32
    %1 = arith.addi %0, %arg2 : i32
    %c0_i32 = arith.constant 0 : i32
    %c0_i32_0 = arith.constant 0 : i32
    %c0_i32_1 = arith.constant 0 : i32
    return %arg0, %c0_i32, %1, %c0_i32_0 : i32, i32, i32, i32
  }
  func.func @transform_1(%arg0: i32, %arg1: i32, %arg2: i32) -> (i32, i32, i32, i32) {
    %c1_i32 = arith.constant 1 : i32
    %0 = arith.muli %arg1, %c1_i32 : i32
    %1 = arith.addi %0, %arg2 : i32
    %c0_i32 = arith.constant 0 : i32
    %c0_i32_0 = arith.constant 0 : i32
    %c0_i32_1 = arith.constant 0 : i32
    return %arg0, %c0_i32, %1, %c0_i32_0 : i32, i32, i32, i32
  }
  func.func @transform_2(%arg0: i32, %arg1: i32, %arg2: i32) -> (i32, i32, i32, i32) {
    %c0_i32 = arith.constant 0 : i32
    %c0_i32_0 = arith.constant 0 : i32
    %c0_i32_1 = arith.constant 0 : i32
    return %arg0, %arg1, %c0_i32, %c0_i32_0 : i32, i32, i32, i32
  }
  func.func @transform_3(%arg0: i32, %arg1: i32, %arg2: i32) -> (i32, i32, i32, i32) {
    %c0_i32 = arith.constant 0 : i32
    %c0_i32_0 = arith.constant 0 : i32
    %c0_i32_1 = arith.constant 0 : i32
    return %arg0, %arg1, %c0_i32, %c0_i32_0 : i32, i32, i32, i32
  }
  func.func @transform_4(%arg0: i32, %arg1: i32, %arg2: i32) -> (i32, i32, i32, i32) {
    %c0_i32 = arith.constant 0 : i32
    %c0_i32_0 = arith.constant 0 : i32
    %c0_i32_1 = arith.constant 0 : i32
    return %arg0, %arg1, %c0_i32, %c0_i32_0 : i32, i32, i32, i32
  }
}

</mosaic_0001>

<llo_original>
// kernel: tpu_custom_call.1
$region0: #{tpu_custom_call.1}
  #allocation0 [shape = 'u32[]', space=smem, size = 0x4, offset = 0x4, fixed_abs, tag = 'smem constant byte address 0x4 - core index']
  #allocation1 [shape = 'u32[144,128]{1,0:T(1,128)}', space=vmem, size = 0x12000, scoped, tag = 'internal scratch']
  #allocation2 [shape = 'f32[2,8,128]{2,1,0:T(8,128)}', space=vmem, size = 0x2000, scoped, tag = 'scratch operand']
  #allocation3 [shape = 'f32[2,8,128]{2,1,0:T(8,128)}', space=vmem, size = 0x2000, scoped, tag = 'scratch operand']
  #allocation4 [shape = 'f32[2,8,128]{2,1,0:T(8,128)}', space=vmem, size = 0x2000, scoped, tag = 'scratch operand']
  %s0 = inlined_call_operand.hbm [shape: f32[2,2,32,128], index: 0, kind: input, shape index: {}]
  %s1 = inlined_call_operand.hbm [shape: s8[2,1,32,128], index: 1, kind: input, shape index: {}]
  %s2 = inlined_call_operand.hbm [shape: f32[2,1,2,128], index: 2, kind: output, shape index: {0}]
  %s3 = inlined_call_operand.hbm [shape: f32[2,1,2,128], index: 3, kind: output, shape index: {1}]
  %s4 = inlined_call_operand.hbm [shape: f32[2,1,2,128], index: 4, kind: output, shape index: {2}]
  %5 = xla_tuple %s2, %s3, %s4
  %s6 = sld [smem:[#allocation0]]
  $region73: #{tpu_custom_call.1} parent=0
    _
  %s8 = ssub.s32 1, %s6
  %s9 = scalar_select 0, %s8, %s6
  $region1: #{tpu_custom_call.1} parent=0
    #allocation5 [shape = 'u8[65536]{0}', space=vmem, size = 0x10000, scoped, tag = 'input window, operand 0']
    #allocation6 [shape = 's32[2]{0}', space=sflag, size = 0x8, scoped, tag = 'scoped memory for tpu_custom_call.1']
    #allocation7 [shape = 's32[2]{0}', space=sflag, size = 0x8, scoped, tag = 'scoped memory for tpu_custom_call.1']
    #allocation8 [shape = 'u8[8192]{0}', space=vmem, size = 0x2000, scoped, tag = 'input window, operand 1']
    #allocation9 [shape = 's32[2]{0}', space=sflag, size = 0x8, scoped, tag = 'scoped memory for tpu_custom_call.1']
    #allocation10 [shape = 'u8[2048]{0}', space=vmem, size = 0x800, scoped, tag = 'output window, operand 0']
    #allocation11 [shape = 'u8[2048]{0}', space=vmem, size = 0x800, scoped, tag = 'output window, operand 1']
    #allocation12 [shape = 's32[2]{0}', space=sflag, size = 0x8, scoped, tag = 'scoped memory for tpu_custom_call.1']
    #allocation13 [shape = 'u8[2048]{0}', space=vmem, size = 0x800, scoped, tag = 'output window, operand 2']
    %10 = vsyncpa [#allocation6], 0
    %s11 = scalar_lea.sflag [#allocation6], 1
    %12 = vsyncpa %s11, 0
    %13 = vsyncpa [#allocation9], 0
    %s14 = scalar_lea.sflag [#allocation9], 1
    %15 = vsyncpa %s14, 0
    %16 = vsyncpa [#allocation7], 0
    %s17 = scalar_lea.sflag [#allocation7], 1
    %18 = vsyncpa %s17, 0
    %19 = vsyncpa [#allocation12], 0
    %s20 = scalar_lea.sflag [#allocation12], 1
    %21 = vsyncpa %s20, 0
    loop: start=0, step=1, limit=4
    $region2: #{tpu_custom_call.1} parent=1 // loop_pre_header
      _
    $region3: #{tpu_custom_call.1} parent=1 // loop_header
      %s23 = sphi 0, %s27
      %p24 = scmp.ge.s32.totalorder %s23, 4
      %s30 = sphi 0, %s49
      %s31 = sphi 0, %s45
      %s32 = sphi 0, %s41
      %s33 = sphi 0, %s30
      %s34 = sphi 0, %s31
      %s35 = sphi 0, %s32
      %s36 = sphi 0, %s33
      %s37 = sphi 0, %s34
      %s38 = sphi 0, %s35
      %s56 = sphi 0, %s58
      %s59 = sphi 0, %s56
      %s60 = sphi 0, %s59
      %s76 = sphi 0, %s60
      %s86 = sphi 0, %s88
      %s89 = sphi 0, %s86
      %s90 = sphi 0, %s89
      %s106 = sphi 0, %s90
      %s114 = sphi 0, %s116
      %s117 = sphi 0, %s114
      %s118 = sphi 0, %s117
      %s134 = sphi 0, %s118
      %s142 = sphi 0, %s144
      %s145 = sphi 0, %s142
      %s146 = sphi 0, %s145
      %s162 = sphi 0, %s146
      %s170 = sphi 0, %s172
      %s173 = sphi 0, %s170
      %s174 = sphi 0, %s173
      %s190 = sphi 0, %s174
    $region4: #{tpu_custom_call.1} parent=1 // loop_header_branch
      %26 = sbr.rel (%p24) target = $region8
    $region5: #{tpu_custom_call.1} parent=1 // loop_body
      %s28 = ssub.s32 %s23, 1
      %s29 = ssub.s32 %s23, 2
      %s39 = sadd.s32 1, %s32
      %p40 = scmp.ge.s32.totalorder %s39, 1
      %s41 = scalar_select %p40, 0, %s39
      %s42 = sadd.s32 1, %s31
      %s43 = scalar_select %p40, %s42, %s31
      %p44 = scmp.ge.s32.totalorder %s43, 1
      %s45 = scalar_select %p44, 0, %s43
      %s46 = sadd.s32 1, %s30
      %s47 = scalar_select %p44, %s46, %s30
      %p48 = scmp.ge.s32.totalorder %s47, 2
      %s49 = scalar_select %p48, 0, %s47
      %s50 = sadd.s32 %s31, %s32
      %s51 = sadd.s32 %s45, %s41
      %s52 = ssub.s32 %s30, %s49
      %s53 = ssub.s32 %s50, %s51
      %s54 = sor.u32 %s52, %s53
      %p55 = scmp.eq.s32.totalorder %s54, 0
      %s57 = sadd.s32 %s56, 1
      %s58 = scalar_select %p55, %s56, %s57
      %p61 = pneg %p55
      %p62 = scmp.eq.s32.totalorder %s23, 1
      %p63 = por %p61, %p62
      %p64 = scmp.ne.s32.totalorder %s56, %s59
      %p65 = scmp.eq.s32.totalorder %s23, 0
      %p66 = por %p64, %p65
      %p67 = scmp.ne.s32.totalorder %s56, %s59
      %p68 = scmp.eq.s32.totalorder %s28, 1
      %p69 = por %p67, %p68
      %p70 = scmp.ne.s32.totalorder %s59, %s60
      %p71 = scmp.eq.s32.totalorder %s28, 0
      %p72 = por %p70, %p71
      %p73 = scmp.ne.s32.totalorder %s59, %s60
      %p74 = scmp.eq.s32.totalorder %s29, 1
      %p75 = por %p73, %p74
      %p77 = scmp.ne.s32.totalorder %s60, %s76
      %p78 = scmp.eq.s32.totalorder %s29, 0
      %p79 = por %p77, %p78
      %s80 = sadd.s32 %s31, %s32
      %s81 = sadd.s32 %s45, %s41
      %s82 = ssub.s32 %s30, %s49
      %s83 = ssub.s32 %s80, %s81
      %s84 = sor.u32 %s82, %s83
      %p85 = scmp.eq.s32.totalorder %s84, 0
      %s87 = sadd.s32 %s86, 1
      %s88 = scalar_select %p85, %s86, %s87
      %p91 = pneg %p85
      %p92 = scmp.eq.s32.totalorder %s23, 1
      %p93 = por %p91, %p92
      %p94 = scmp.ne.s32.totalorder %s86, %s89
      %p95 = scmp.eq.s32.totalorder %s23, 0
      %p96 = por %p94, %p95
      %p97 = scmp.ne.s32.totalorder %s86, %s89
      %p98 = scmp.eq.s32.totalorder %s28, 1
      %p99 = por %p97, %p98
      %p100 = scmp.ne.s32.totalorder %s89, %s90
      %p101 = scmp.eq.s32.totalorder %s28, 0
      %p102 = por %p100, %p101
      %p103 = scmp.ne.s32.totalorder %s89, %s90
      %p104 = scmp.eq.s32.totalorder %s29, 1
      %p105 = por %p103, %p104
      %p107 = scmp.ne.s32.totalorder %s90, %s106
      %p108 = scmp.eq.s32.totalorder %s29, 0
      %p109 = por %p107, %p108
      %s110 = ssub.s32 %s30, %s49
      %s111 = ssub.s32 %s31, %s45
      %s112 = sor.u32 %s110, %s111
      %p113 = scmp.eq.s32.totalorder %s112, 0
      %s115 = sadd.s32 %s114, 1
      %s116 = scalar_select %p113, %s114, %s115
      %p119 = pneg %p113
      %p120 = scmp.eq.s32.totalorder %s23, 1
      %p121 = por %p119, %p120
      %p122 = scmp.ne.s32.totalorder %s114, %s117
      %p123 = scmp.eq.s32.totalorder %s23, 0
      %p124 = por %p122, %p123
      %p125 = scmp.ne.s32.totalorder %s114, %s117
      %p126 = scmp.eq.s32.totalorder %s28, 1
      %p127 = por %p125, %p126
      %p128 = scmp.ne.s32.totalorder %s117, %s118
      %p129 = scmp.eq.s32.totalorder %s28, 0
      %p130 = por %p128, %p129
      %p131 = scmp.ne.s32.totalorder %s117, %s118
      %p132 = scmp.eq.s32.totalorder %s29, 1
      %p133 = por %p131, %p132
      %p135 = scmp.ne.s32.totalorder %s118, %s134
      %p136 = scmp.eq.s32.totalorder %s29, 0
      %p137 = por %p135, %p136
      %s138 = ssub.s32 %s30, %s49
      %s139 = ssub.s32 %s31, %s45
      %s140 = sor.u32 %s138, %s139
      %p141 = scmp.eq.s32.totalorder %s140, 0
      %s143 = sadd.s32 %s142, 1
      %s144 = scalar_select %p141, %s142, %s143
      %p147 = pneg %p141
      %p148 = scmp.eq.s32.totalorder %s23, 1
      %p149 = por %p147, %p148
      %p150 = scmp.ne.s32.totalorder %s142, %s145
      %p151 = scmp.eq.s32.totalorder %s23, 0
      %p152 = por %p150, %p151
      %p153 = scmp.ne.s32.totalorder %s142, %s145
      %p154 = scmp.eq.s32.totalorder %s28, 1
      %p155 = por %p153, %p154
      %p156 = scmp.ne.s32.totalorder %s145, %s146
      %p157 = scmp.eq.s32.totalorder %s28, 0
      %p158 = por %p156, %p157
      %p159 = scmp.ne.s32.totalorder %s145, %s146
      %p160 = scmp.eq.s32.totalorder %s29, 1
      %p161 = por %p159, %p160
      %p163 = scmp.ne.s32.totalorder %s146, %s162
      %p164 = scmp.eq.s32.totalorder %s29, 0
      %p165 = por %p163, %p164
      %s166 = ssub.s32 %s30, %s49
      %s167 = ssub.s32 %s31, %s45
      %s168 = sor.u32 %s166, %s167
      %p169 = scmp.eq.s32.totalorder %s168, 0
      %s171 = sadd.s32 %s170, 1
      %s172 = scalar_select %p169, %s170, %s171
      %p175 = pneg %p169
      %p176 = scmp.eq.s32.totalorder %s23, 1
      %p177 = por %p175, %p176
      %p178 = scmp.ne.s32.totalorder %s170, %s173
      %p179 = scmp.eq.s32.totalorder %s23, 0
      %p180 = por %p178, %p179
      %p181 = scmp.ne.s32.totalorder %s170, %s173
      %p182 = scmp.eq.s32.totalorder %s28, 1
      %p183 = por %p181, %p182
      %p184 = scmp.ne.s32.totalorder %s173, %s174
      %p185 = scmp.eq.s32.totalorder %s28, 0
      %p186 = por %p184, %p185
      %p187 = scmp.ne.s32.totalorder %s173, %s174
      %p188 = scmp.eq.s32.totalorder %s29, 1
      %p189 = por %p187, %p188
      %p191 = scmp.ne.s32.totalorder %s174, %s190
      %p192 = scmp.eq.s32.totalorder %s29, 0
      %p193 = por %p191, %p192
      %p194 = scmp.le.s32.totalorder 1, %s23
      %p195 = scmp.lt.s32.totalorder %s23, 3
      %p196 = pnand %p194, %p195
      %p197 = pneg %p196
      // Predicated region
      $region9: #{tpu_custom_call.1} parent=5 // pred_check
        _
      $region10: #{tpu_custom_call.1} parent=5 // pred_check_branch
        %199 = sbr.rel (%p196) target = $region12
      $region11: #{tpu_custom_call.1} parent=5 // pred_region
        %s200 = ssub.s32 %s23, 1
      $region12: #{tpu_custom_call.1} parent=5 // pred_fallthru
        _
      %p201 = scmp.lt.s32.totalorder %s23, 2
      // Predicated region
      $region13: #{tpu_custom_call.1} parent=5 // pred_check
        %p202 = pneg %p201
      $region14: #{tpu_custom_call.1} parent=5 // pred_check_branch
        %204 = sbr.rel (%p202) target = $region16
      $region15: #{tpu_custom_call.1} parent=5 // pred_region
        // Predicated region
        $region17: #{tpu_custom_call.1} parent=15 // pred_check
          %p205 = pneg %p66
        $region18: #{tpu_custom_call.1} parent=15 // pred_check_branch
          %207 = sbr.rel (%p205) target = $region20
        $region19: #{tpu_custom_call.1} parent=15 // pred_region
          %s208 = sand.u32 %s56, 1
          %s209 = scalar_lea.sflag [#allocation6], %s208
          %s210 = sand.u32 %s56, 1
          %s211 = smul.addr %s210, 64
          %s212 = scalar_lea.vmem [#allocation5], %s211
          %s213 = sadd.s32 %s31, %s32
          %s214 = smul.u32 4, %s213
          %s216 = ssub.s32 1024, 1024
          %217 = vsyncadd %s209, %s216
          %s218 = smul.addr %s30, 8
          %s219 = sadd.s32 %s214, %s218
          %s220 = smul.addr %s219, 128
          %s221 = scalar_lea.hbm %s0, %s220
          %s222 = sshll.u32 %s212, 4
          %s223 = int_to_ptr.vmem [resolvable:$true] %s222
          %228 = dma.hbm_to_vmem [thread:$0]  %s221, 1024, %s223, %s209, 128, 128, 8
        $region20: #{tpu_custom_call.1} parent=15 // pred_fallthru
          _
        // Predicated region
        $region21: #{tpu_custom_call.1} parent=15 // pred_check
          %p229 = pneg %p96
        $region22: #{tpu_custom_call.1} parent=15 // pred_check_branch
          %231 = sbr.rel (%p229) target = $region24
        $region23: #{tpu_custom_call.1} parent=15 // pred_region
          %s232 = sand.u32 %s86, 1
          %s233 = scalar_lea.sflag [#allocation9], %s232
          %s234 = sand.u32 %s86, 1
          %s235 = smul.addr %s234, 8
          %s236 = scalar_lea.vmem [#allocation8], %s235
          %s237 = sadd.s32 %s31, %s32
          %s239 = ssub.s32 128, 128
          %240 = vsyncadd %s233, %s239
          %s241 = sadd.s32 %s237, %s30
          %s242 = smul.addr %s241, 128
          %s243 = scalar_lea.hbm %s1, %s242
          %s245 = sshll.u32 %s236, 4
          %s246 = int_to_ptr.vmem [resolvable:$true] %s245
          %248 = dma.hbm_to_vmem [thread:$0]  %s243, 128, %s246, %s233
        $region24: #{tpu_custom_call.1} parent=15 // pred_fallthru
          _
      $region16: #{tpu_custom_call.1} parent=5 // pred_fallthru
        _
      %p249 = scmp.le.s32.totalorder 1, %s23
      %p250 = scmp.lt.s32.totalorder %s23, 3
      %p251 = pnand %p249, %p250
      %p252 = pneg %p251
      // Predicated region
      $region25: #{tpu_custom_call.1} parent=5 // pred_check
        _
      $region26: #{tpu_custom_call.1} parent=5 // pred_check_branch
        %254 = sbr.rel (%p251) target = $region28
      $region27: #{tpu_custom_call.1} parent=5 // pred_region
        %s255 = ssub.s32 %s23, 1
        %s256 = sand.u32 %s59, 1
        %s257 = scalar_lea.sflag [#allocation6], %s256
        %s258 = sand.u32 %s59, 1
        %s259 = smul.addr %s258, 64
        %s260 = scalar_lea.vmem [#allocation5], %s259
        // Predicated region
        $region29: #{tpu_custom_call.1} parent=27 // pred_check
          %p261 = pneg %p72
        $region30: #{tpu_custom_call.1} parent=27 // pred_check_branch
          %263 = sbr.rel (%p261) target = $region32
        $region31: #{tpu_custom_call.1} parent=27 // pred_region
          %264 = dma.done %s257, 1024
        $region32: #{tpu_custom_call.1} parent=27 // pred_fallthru
          _
        %s265 = sand.u32 %s89, 1
        %s266 = scalar_lea.sflag [#allocation9], %s265
        %s267 = sand.u32 %s89, 1
        %s268 = smul.addr %s267, 8
        %s269 = scalar_lea.vmem [#allocation8], %s268
        // Predicated region
        $region33: #{tpu_custom_call.1} parent=27 // pred_check
          %p270 = pneg %p102
        $region34: #{tpu_custom_call.1} parent=27 // pred_check_branch
          %272 = sbr.rel (%p270) target = $region36
        $region35: #{tpu_custom_call.1} parent=27 // pred_region
          %273 = dma.done %s266, 128
        $region36: #{tpu_custom_call.1} parent=27 // pred_fallthru
          _
        %s274 = sand.u32 %s59, 1
        %s275 = scalar_lea.sflag [#allocation6], %s274
        %s276 = sand.u32 %s59, 1
        %s277 = smul.addr %s276, 64
        %s278 = scalar_lea.vmem [#allocation5], %s277
        %p279 = pneg %p72
        %p280 = pneg %p69
        %s281 = sand.u32 %s89, 1
        %s282 = scalar_lea.sflag [#allocation9], %s281
        %s283 = sand.u32 %s89, 1
        %s284 = smul.addr %s283, 8
        %s285 = scalar_lea.vmem [#allocation8], %s284
        %p286 = pneg %p102
        %p287 = pneg %p99
        %p288 = pneg %p130
        %p289 = pneg %p127
        %s290 = sand.u32 %s117, 1
        %s291 = scalar_lea.sflag [#allocation7], %s290
        %s292 = sand.u32 %s117, 1
        %s293 = smul.addr %s292, 2
        %s294 = scalar_lea.vmem [#allocation10], %s293
        %p295 = pneg %p158
        %p296 = pneg %p155
        %s297 = sand.u32 %s28, 1
        %s298 = scalar_lea.sflag [#allocation12], %s297
        %s299 = sand.u32 %s145, 1
        %s300 = smul.addr %s299, 2
        %s301 = scalar_lea.vmem [#allocation11], %s300
        %p302 = pneg %p186
        %p303 = pneg %p183
        %s304 = sand.u32 %s28, 1
        %s305 = scalar_lea.sflag [#allocation12], %s304
        %s306 = sand.u32 %s173, 1
        %s307 = smul.addr %s306, 2
        %s308 = scalar_lea.vmem [#allocation13], %s307
        %s309 = sadd.s32 %s34, %s35
        %s310 = smul.u32 4, %s309
        %s311 = sadd.s32 %s34, %s35
        %p312 = scmp.eq.s32.totalorder %s35, 0
        // Predicated region
        $region37: #{tpu_custom_call.1} parent=27 // pred_check
          %p313 = pneg %p312
        $region38: #{tpu_custom_call.1} parent=27 // pred_check_branch
          %315 = sbr.rel (%p313) target = $region40
        $region39: #{tpu_custom_call.1} parent=27 // pred_region
          %316 = vst [vmem:[#allocation2] sm:$0xff] 0.0
          %317 = vst [vmem:[#allocation2 + $0x8] sm:$0xff] 0.0
          %318 = vst [vmem:[#allocation3] sm:$0xff] 0.0
          %319 = vst [vmem:[#allocation3 + $0x8] sm:$0xff] 0.0
          %320 = vst [vmem:[#allocation4] sm:$0xff] 0.0
          %321 = vst [vmem:[#allocation4 + $0x8] sm:$0xff] 0.0
        $region40: #{tpu_custom_call.1} parent=27 // pred_fallthru
          _
        %v322 = vld [vmem:[%s260] sm:$0xff]
        %v323 = vld [vmem:[%s260 + $0x8] sm:$0xff]
        %v324 = vld [vmem:[%s260 + $0x10] sm:$0xff]
        %v325 = vld [vmem:[%s260 + $0x18] sm:$0xff]
        %v326 = vld [vmem:[%s260 + $0x20] sm:$0xff]
        %v327 = vld [vmem:[%s260 + $0x28] sm:$0xff]
        %v328 = vld [vmem:[%s260 + $0x30] sm:$0xff]
        %v329 = vld [vmem:[%s260 + $0x38] sm:$0xff]
        %v330 = vld [vmem:[%s269] sm:$0xff]
        %v331 = vunpack.c.0.s8 %v330
        %v332 = vunpack.c.1.s8 %v330
        %v333 = vunpack.c.2.s8 %v330
        %v334 = vunpack.c.3.s8 %v330
        %v335 = vmax.f32 %v322, %v326
        %v336 = vmax.f32 %v323, %v327
        %v337 = vmax.f32 %v324, %v328
        %v338 = vmax.f32 %v325, %v329
        %v339 = vsub.f32 %v322, %v335
        %v340 = vsub.f32 %v323, %v336
        %v341 = vsub.f32 %v324, %v337
        %v342 = vsub.f32 %v325, %v338
        %v343 = vsub.f32 %v326, %v335
        %v344 = vsub.f32 %v327, %v336
        %v345 = vsub.f32 %v328, %v337
        %v346 = vsub.f32 %v329, %v338
        %v347 = vmul.f32 %v339, 1.442695
        %v348 = vpow.pop %v347
        %v349 = vmul.f32 %v340, 1.442695
        %v350 = vpow.pop %v349
        %v351 = vmul.f32 %v341, 1.442695
        %v352 = vpow.pop %v351
        %v353 = vmul.f32 %v342, 1.442695
        %v354 = vpow.pop %v353
        %v355 = vmul.f32 %v343, 1.442695
        %v356 = vpow.pop %v355
        %v357 = vmul.f32 %v344, 1.442695
        %v358 = vpow.pop %v357
        %v359 = vmul.f32 %v345, 1.442695
        %v360 = vpow.pop %v359
        %v361 = vmul.f32 %v346, 1.442695
        %v362 = vpow.pop %v361
        %v363 = vadd.f32 %v348, %v356
        %v364 = vadd.f32 %v350, %v358
        %v365 = vadd.f32 %v352, %v360
        %v366 = vadd.f32 %v354, %v362
        %v367 = vrcp.pop %v363
        %v368 = vrcp.pop %v364
        %v369 = vrcp.pop %v365
        %v370 = vrcp.pop %v366
        %v371 = vmul.f32 %v348, %v367
        %v372 = vmul.f32 %v350, %v368
        %v373 = vmul.f32 %v352, %v369
        %v374 = vmul.f32 %v354, %v370
        %v375 = vmul.f32 %v356, %v367
        %v376 = vmul.f32 %v358, %v368
        %v377 = vmul.f32 %v360, %v369
        %v378 = vmul.f32 %v362, %v370
        %vm379 = vcmp.eq.s32.totalorder %v331, 0
        %vm380 = vcmp.eq.s32.totalorder %v332, 0
        %vm381 = vcmp.eq.s32.totalorder %v333, 0
        %vm382 = vcmp.eq.s32.totalorder %v334, 0
        %vm383 = vcmp.eq.s32.totalorder %v331, 1
        %vm384 = vcmp.eq.s32.totalorder %v332, 1
        %vm385 = vcmp.eq.s32.totalorder %v333, 1
        %vm386 = vcmp.eq.s32.totalorder %v334, 1
        %v387 = vsel %vm379, 1, 0
        %v388 = vsel %vm380, 1, 0
        %v389 = vsel %vm381, 1, 0
        %v390 = vsel %vm382, 1, 0
        %v391 = vsel %vm383, 1, 0
        %v392 = vsel %vm384, 1, 0
        %v393 = vsel %vm385, 1, 0
        %v394 = vsel %vm386, 1, 0
        %v395 = vcvt.s32.f32 %v387
        %v396 = vcvt.s32.f32 %v388
        %v397 = vcvt.s32.f32 %v389
        %v398 = vcvt.s32.f32 %v390
        %v399 = vcvt.s32.f32 %v391
        %v400 = vcvt.s32.f32 %v392
        %v401 = vcvt.s32.f32 %v393
        %v402 = vcvt.s32.f32 %v394
        %v403 = vld [vmem:[#allocation2] sm:$0xff]
        %v404 = vld [vmem:[#allocation2 + $0x8] sm:$0xff]
        %v405 = vmul.f32 %v371, %v395
        %v406 = vmul.f32 %v372, %v396
        %v407 = vmul.f32 %v373, %v397
        %v408 = vmul.f32 %v374, %v398
        %v409 = vmul.f32 %v375, %v399
        %v410 = vmul.f32 %v376, %v400
        %v411 = vmul.f32 %v377, %v401
        %v412 = vmul.f32 %v378, %v402
        %v413 = vadd.f32 %v405, %v406
        %v414 = vadd.f32 %v413, %v407
        %v415 = vadd.f32 %v414, %v408
        %v416 = vadd.f32 %v409, %v410
        %v417 = vadd.f32 %v416, %v411
        %v418 = vadd.f32 %v417, %v412
        %v419 = vadd.f32 %v403, %v415
        %v420 = vadd.f32 %v404, %v418
        %421 = vst [vmem:[#allocation2] sm:$0xff] %v419
        %422 = vst [vmem:[#allocation2 + $0x8] sm:$0xff] %v420
        %v423 = vld [vmem:[#allocation3] sm:$0xff]
        %v424 = vld [vmem:[#allocation3 + $0x8] sm:$0xff]
        %v425 = vadd.f32 %v371, %v372
        %v426 = vadd.f32 %v425, %v373
        %v427 = vadd.f32 %v426, %v374
        %v428 = vadd.f32 %v375, %v376
        %v429 = vadd.f32 %v428, %v377
        %v430 = vadd.f32 %v429, %v378
        %v431 = vadd.f32 %v423, %v427
        %v432 = vadd.f32 %v424, %v430
        %433 = vst [vmem:[#allocation3] sm:$0xff] %v431
        %434 = vst [vmem:[#allocation3 + $0x8] sm:$0xff] %v432
        %v435 = vld [vmem:[#allocation4] sm:$0xff]
        %v436 = vld [vmem:[#allocation4 + $0x8] sm:$0xff]
        %v437 = vadd.f32 %v395, %v396
        %v438 = vadd.f32 %v437, %v397
        %v439 = vadd.f32 %v438, %v398
        %v440 = vadd.f32 %v399, %v400
        %v441 = vadd.f32 %v440, %v401
        %v442 = vadd.f32 %v441, %v402
        %v443 = vadd.f32 %v435, %v439
        %v444 = vadd.f32 %v436, %v442
        %445 = vst [vmem:[#allocation4] sm:$0xff] %v443
        %446 = vst [vmem:[#allocation4 + $0x8] sm:$0xff] %v444
        // Predicated region
        $region41: #{tpu_custom_call.1} parent=27 // pred_check
          %p447 = pneg %p312
        $region42: #{tpu_custom_call.1} parent=27 // pred_check_branch
          %449 = sbr.rel (%p447) target = $region44
        $region43: #{tpu_custom_call.1} parent=27 // pred_region
          %v450 = vld [vmem:[#allocation2] sm:$0xff]
          %v451 = vld [vmem:[#allocation2 + $0x8] sm:$0xff]
          %v452 = vrot.slane %v450, 4
          %v453 = vadd.f32 %v450, %v452
          %v454 = vrot.slane %v453, 2
          %v455 = vadd.f32 %v453, %v454
          %v456 = vrot.slane %v455, 1
          %v457 = vadd.f32 %v455, %v456
          %v458 = vrot.slane %v451, 4
          %v459 = vadd.f32 %v451, %v458
          %v460 = vrot.slane %v459, 2
          %v461 = vadd.f32 %v459, %v460
          %v462 = vrot.slane %v461, 1
          %v463 = vadd.f32 %v461, %v462
          %vm466 = vcmask 1041409
          %v467 = vsel %vm466, %v463, %v457
          %469 = vst [vmem:[%s294] sm:$0x3] %v467
          %v470 = vld [vmem:[#allocation3] sm:$0xff]
          %v471 = vld [vmem:[#allocation3 + $0x8] sm:$0xff]
          %v472 = vrot.slane %v470, 4
          %v473 = vadd.f32 %v470, %v472
          %v474 = vrot.slane %v473, 2
          %v475 = vadd.f32 %v473, %v474
          %v476 = vrot.slane %v475, 1
          %v477 = vadd.f32 %v475, %v476
          %v478 = vrot.slane %v471, 4
          %v479 = vadd.f32 %v471, %v478
          %v480 = vrot.slane %v479, 2
          %v481 = vadd.f32 %v479, %v480
          %v482 = vrot.slane %v481, 1
          %v483 = vadd.f32 %v481, %v482
          %v486 = vsel %vm466, %v483, %v477
          %488 = vst [vmem:[%s301] sm:$0x3] %v486
          %v489 = vld [vmem:[#allocation4] sm:$0xff]
          %v490 = vld [vmem:[#allocation4 + $0x8] sm:$0xff]
          %v491 = vrot.slane %v489, 4
          %v492 = vadd.f32 %v489, %v491
          %v493 = vrot.slane %v492, 2
          %v494 = vadd.f32 %v492, %v493
          %v495 = vrot.slane %v494, 1
          %v496 = vadd.f32 %v494, %v495
          %v497 = vrot.slane %v490, 4
          %v498 = vadd.f32 %v490, %v497
          %v499 = vrot.slane %v498, 2
          %v500 = vadd.f32 %v498, %v499
          %v501 = vrot.slane %v500, 1
          %v502 = vadd.f32 %v500, %v501
          %v505 = vsel %vm466, %v502, %v496
          %507 = vst [vmem:[%s308] sm:$0x3] %v505
        $region44: #{tpu_custom_call.1} parent=27 // pred_fallthru
          _
        %s508 = sand.u32 %s117, 1
        %s509 = scalar_lea.sflag [#allocation7], %s508
        %s510 = sand.u32 %s117, 1
        %s511 = smul.addr %s510, 2
        %s512 = scalar_lea.vmem [#allocation10], %s511
        %s513 = sand.u32 %s28, 1
        %s514 = scalar_lea.sflag [#allocation12], %s513
        %s515 = sand.u32 %s145, 1
        %s516 = smul.addr %s515, 2
        %s517 = scalar_lea.vmem [#allocation11], %s516
        %s518 = sand.u32 %s28, 1
        %s519 = scalar_lea.sflag [#allocation12], %s518
        %s520 = sand.u32 %s173, 1
        %s521 = smul.addr %s520, 2
        %s522 = scalar_lea.vmem [#allocation13], %s521
        // Predicated region
        $region45: #{tpu_custom_call.1} parent=27 // pred_check
          %p523 = pneg %p127
        $region46: #{tpu_custom_call.1} parent=27 // pred_check_branch
          %525 = sbr.rel (%p523) target = $region48
        $region47: #{tpu_custom_call.1} parent=27 // pred_region
          %s527 = ssub.s32 32, 32
          %528 = vsyncadd %s509, %s527
          %s529 = sadd.s32 %s34, %s33
          %s530 = smul.addr %s529, 32
          %s531 = scalar_lea.hbm %s2, %s530
          %s533 = sshll.u32 %s512, 4
          %s534 = int_to_ptr.vmem [resolvable:$true] %s533
          %536 = dma.vmem_to_hbm [thread:$0]  %s534, 32, %s531, %s509
        $region48: #{tpu_custom_call.1} parent=27 // pred_fallthru
          _
        // Predicated region
        $region49: #{tpu_custom_call.1} parent=27 // pred_check
          %p537 = pneg %p155
        $region50: #{tpu_custom_call.1} parent=27 // pred_check_branch
          %539 = sbr.rel (%p537) target = $region52
        $region51: #{tpu_custom_call.1} parent=27 // pred_region
          %s541 = ssub.s32 32, 32
          %542 = vsyncadd %s514, %s541
          %s543 = sadd.s32 %s34, %s33
          %s544 = smul.addr %s543, 32
          %s545 = scalar_lea.hbm %s3, %s544
          %s547 = sshll.u32 %s517, 4
          %s548 = int_to_ptr.vmem [resolvable:$true] %s547
          %550 = dma.vmem_to_hbm [thread:$0]  %s548, 32, %s545, %s514
        $region52: #{tpu_custom_call.1} parent=27 // pred_fallthru
          _
        // Predicated region
        $region53: #{tpu_custom_call.1} parent=27 // pred_check
          %p551 = pneg %p183
        $region54: #{tpu_custom_call.1} parent=27 // pred_check_branch
          %553 = sbr.rel (%p551) target = $region56
        $region55: #{tpu_custom_call.1} parent=27 // pred_region
          %s555 = ssub.s32 32, 32
          %556 = vsyncadd %s519, %s555
          %s557 = sadd.s32 %s34, %s33
          %s558 = smul.addr %s557, 32
          %s559 = scalar_lea.hbm %s4, %s558
          %s561 = sshll.u32 %s522, 4
          %s562 = int_to_ptr.vmem [resolvable:$true] %s561
          %564 = dma.vmem_to_hbm [thread:$0]  %s562, 32, %s559, %s519
        $region56: #{tpu_custom_call.1} parent=27 // pred_fallthru
          _
      $region28: #{tpu_custom_call.1} parent=5 // pred_fallthru
        _
      %p565 = scmp.le.s32.totalorder 2, %s23
      // Predicated region
      $region57: #{tpu_custom_call.1} parent=5 // pred_check
        %p566 = pneg %p565
      $region58: #{tpu_custom_call.1} parent=5 // pred_check_branch
        %568 = sbr.rel (%p566) target = $region60
      $region59: #{tpu_custom_call.1} parent=5 // pred_region
        %s569 = ssub.s32 %s23, 2
        // Predicated region
        $region61: #{tpu_custom_call.1} parent=59 // pred_check
          %p570 = pneg %p133
        $region62: #{tpu_custom_call.1} parent=59 // pred_check_branch
          %572 = sbr.rel (%p570) target = $region64
        $region63: #{tpu_custom_call.1} parent=59 // pred_region
          %s573 = sand.u32 %s118, 1
          %s574 = scalar_lea.sflag [#allocation7], %s573
          %s575 = sand.u32 %s118, 1
          %s576 = smul.addr %s575, 2
          %s577 = scalar_lea.vmem [#allocation10], %s576
          %578 = dma.done %s574, 32
        $region64: #{tpu_custom_call.1} parent=59 // pred_fallthru
          _
        // Predicated region
        $region65: #{tpu_custom_call.1} parent=59 // pred_check
          %p579 = pneg %p161
        $region66: #{tpu_custom_call.1} parent=59 // pred_check_branch
          %581 = sbr.rel (%p579) target = $region68
        $region67: #{tpu_custom_call.1} parent=59 // pred_region
          %s582 = sand.u32 %s29, 1
          %s583 = scalar_lea.sflag [#allocation12], %s582
          %s584 = sand.u32 %s146, 1
          %s585 = smul.addr %s584, 2
          %s586 = scalar_lea.vmem [#allocation11], %s585
          %587 = dma.done %s583, 32
        $region68: #{tpu_custom_call.1} parent=59 // pred_fallthru
          _
        // Predicated region
        $region69: #{tpu_custom_call.1} parent=59 // pred_check
          %p588 = pneg %p189
        $region70: #{tpu_custom_call.1} parent=59 // pred_check_branch
          %590 = sbr.rel (%p588) target = $region72
        $region71: #{tpu_custom_call.1} parent=59 // pred_region
          %s591 = sand.u32 %s29, 1
          %s592 = scalar_lea.sflag [#allocation12], %s591
          %s593 = sand.u32 %s174, 1
          %s594 = smul.addr %s593, 2
          %s595 = scalar_lea.vmem [#allocation13], %s594
          %596 = dma.done %s592, 32
        $region72: #{tpu_custom_call.1} parent=59 // pred_fallthru
          _
      $region60: #{tpu_custom_call.1} parent=5 // pred_fallthru
        _
    $region6: #{tpu_custom_call.1} parent=1 // loop_footer
      %s27 = sadd.s32 1, %s23
    $region7: #{tpu_custom_call.1} parent=1 // loop_footer_branch
      %22 = sbr.rel target = $region3
    $region8: #{tpu_custom_call.1} parent=1 // loop_exit
      _
    %597 = vsyncpa [#allocation6], 1
    %s598 = scalar_lea.sflag [#allocation6], 1
    %599 = vsyncpa %s598, 1
    %600 = vsyncpa [#allocation9], 1
    %s601 = scalar_lea.sflag [#allocation9], 1
    %602 = vsyncpa %s601, 1
    %603 = vsyncpa [#allocation7], 1
    %s604 = scalar_lea.sflag [#allocation7], 1
    %605 = vsyncpa %s604, 1
    %606 = vsyncpa [#allocation12], 1
    %s607 = scalar_lea.sflag [#allocation12], 1
    %608 = vsyncpa %s607, 1

</llo_original>
